<compile_context>
chip_gen: v5e
topology: v5e:2x2
jax: 0.10.0
libtpu: 0.0.40
codegen_flags: <defaults>
</compile_context>

<pallas_src>
import functools
import math

import jax
import jax.numpy as jnp
from jax.experimental import pallas as pl
from jax.experimental.pallas import tpu as pltpu

_VMEM_LIMIT_BYTES = 40 << 20   # explicit scoped-VMEM limit (safe on 64 MiB v7x)
_VMEM_BUDGET_BYTES = 24 << 20  # double-buffered footprint target (headroom kept)


def _round_up(v, m):
    return ((v + m - 1) // m) * m


def _min_rows(dtype):
    # Sublane granularity: 8 rows (f32/i32), 16 (bf16/f16), 32 (int8/fp8).
    return max(8, 32 // jnp.dtype(dtype).itemsize)


def _pick_tile_n(N, bytes_per_row, weight_bytes, min_rows,
                 target_bytes=2 << 20):
    """Row-tile size: ~target_bytes streamed per step, VMEM-capped, >=2 steps."""
    tile_n = _round_up(max(1, target_bytes // max(1, bytes_per_row)), min_rows)

    # Double-buffered streams (x tile + out tile) + double-buffered resident
    # weight must fit the VMEM budget (re-derived per call, v7x-safe).
    avail = max(0, _VMEM_BUDGET_BYTES - 2 * weight_bytes)
    cap_rows = max(min_rows, (avail // max(1, 2 * bytes_per_row)) // min_rows * min_rows)
    tile_n = min(tile_n, cap_rows)

    # Never (much) larger than the problem itself.
    tile_n = max(min_rows, min(tile_n, _round_up(N, min_rows)))

    # Megacore (v7x): make sure there are >= 2 grid steps to shard when N allows.
    if pl.cdiv(N, tile_n) < 2 and N > min_rows:
        tile_n = _round_up(pl.cdiv(N, 2), min_rows)
    return tile_n


def _linear_embed_kernel(x_ref, w_ref, o_ref, *, inv_sqrt_fan_in):
    x = x_ref[...]
    w = w_ref[...]
    if jnp.issubdtype(x.dtype, jnp.floating):
        if w.dtype != x.dtype:
            w = w.astype(x.dtype)          # cast the small resident operand
    else:
        x = x.astype(w.dtype)              # integer one-hot -> float compute
    y = jnp.dot(x, w, preferred_element_type=jnp.float32)
    # e3nn path normalization as one scalar VPU multiply (hidden under MXU/DMA).
    o_ref[...] = (y * inv_sqrt_fan_in).astype(o_ref.dtype)


def _species_embed_kernel(s_ref, w_ref, o_ref, *, inv_sqrt_fan_in, num_elements):
    sp = s_ref[...]                        # (tile_n, 1) int32 species ids
    w = w_ref[...]
    iota = jax.lax.broadcasted_iota(jnp.int32, (sp.shape[0], num_elements), 1)
    onehot = (iota == sp).astype(w.dtype)  # VPU one-hot, hidden under DMA slack
    y = jnp.dot(onehot, w, preferred_element_type=jnp.float32)
    o_ref[...] = (y * inv_sqrt_fan_in).astype(o_ref.dtype)


def _pad_weight_lane_dense(weight):
    """Pad hidden width to a multiple of 128 once (unmasked vst stores)."""
    c_in, c_out = weight.shape
    c_out_pad = _round_up(c_out, 128)
    if c_out_pad != c_out:
        weight = jnp.pad(weight, ((0, 0), (0, c_out_pad - c_out)))
    return weight, c_out_pad


def linear_node_embedding(node_attrs, weight, *, target_tile_bytes=2 << 20,
                          keep_padded_out=False):
    """node_attrs: [N, C_in]; weight: [C_in, C_out] (e3nn ~N(0,1)) -> [N, C_out]."""
    N, C_in = node_attrs.shape
    assert weight.shape[0] == C_in
    C_out = weight.shape[1]

    x_dt = jnp.dtype(node_attrs.dtype)
    w_dt = jnp.dtype(weight.dtype)
    out_dt = x_dt if jnp.issubdtype(x_dt, jnp.floating) else w_dt

    w, C_out_pad = _pad_weight_lane_dense(weight)

    min_rows = max(_min_rows(x_dt), _min_rows(out_dt))
    bytes_per_row = C_in * x_dt.itemsize + C_out_pad * out_dt.itemsize
    weight_bytes = C_in * C_out_pad * w_dt.itemsize
    tile_n = _pick_tile_n(N, bytes_per_row, weight_bytes, min_rows,
                          target_tile_bytes)
    grid = (pl.cdiv(N, tile_n),)

    kernel = functools.partial(_linear_embed_kernel,
                               inv_sqrt_fan_in=1.0 / math.sqrt(C_in))
    cost = pl.CostEstimate(
        flops=2 * N * C_in * C_out_pad,
        transcendentals=0,
        bytes_accessed=N * C_in * x_dt.itemsize
                       + N * C_out_pad * out_dt.itemsize
                       + weight_bytes)

    out = pl.pallas_call(
        kernel,
        out_shape=jax.ShapeDtypeStruct((N, C_out_pad), out_dt),
        grid_spec=pl.GridSpec(
            grid=grid,
            in_specs=[
                pl.BlockSpec((tile_n, C_in), lambda i: (i, 0)),       # streamed rows
                pl.BlockSpec((C_in, C_out_pad), lambda i: (0, 0)),    # resident weight
            ],
            out_specs=pl.BlockSpec((tile_n, C_out_pad), lambda i: (i, 0)),
        ),
        compiler_params=pltpu.CompilerParams(
            dimension_semantics=("parallel",),       # megacore rows on v7x
            vmem_limit_bytes=_VMEM_LIMIT_BYTES,
        ),
        cost_estimate=cost,
    )(node_attrs, w)

    if C_out_pad != C_out and not keep_padded_out:
        out = out[:, :C_out]
    return out


def linear_node_embedding_from_species(species, weight, *,
                                       target_tile_bytes=2 << 20,
                                       keep_padded_out=False):
    """species: [N] int ids in [0, C_in); weight: [C_in, C_out] -> [N, C_out].

    Index-streaming fast path: same math as linear_node_embedding on the
    one-hot of `species`, but streams N*4 bytes instead of N*C_in*itemsize.
    """
    (N,) = species.shape
    C_in, C_out = weight.shape
    w_dt = jnp.dtype(weight.dtype)
    out_dt = w_dt

    w, C_out_pad = _pad_weight_lane_dense(weight)
    sp = species.astype(jnp.int32).reshape(N, 1)

    min_rows = max(8, _min_rows(out_dt))
    bytes_per_row = 4 + C_out_pad * out_dt.itemsize
    weight_bytes = C_in * C_out_pad * w_dt.itemsize
    tile_n = _pick_tile_n(N, bytes_per_row, weight_bytes, min_rows,
                          target_tile_bytes)
    grid = (pl.cdiv(N, tile_n),)

    kernel = functools.partial(_species_embed_kernel,
                               inv_sqrt_fan_in=1.0 / math.sqrt(C_in),
                               num_elements=C_in)
    cost = pl.CostEstimate(
        flops=2 * N * C_in * C_out_pad,
        transcendentals=0,
        bytes_accessed=N * 4 + N * C_out_pad * out_dt.itemsize + weight_bytes)

    out = pl.pallas_call(
        kernel,
        out_shape=jax.ShapeDtypeStruct((N, C_out_pad), out_dt),
        grid_spec=pl.GridSpec(
            grid=grid,
            in_specs=[
                pl.BlockSpec((tile_n, 1), lambda i: (i, 0)),          # species ids
                pl.BlockSpec((C_in, C_out_pad), lambda i: (0, 0)),    # resident weight
            ],
            out_specs=pl.BlockSpec((tile_n, C_out_pad), lambda i: (i, 0)),
        ),
        compiler_params=pltpu.CompilerParams(
            dimension_semantics=("parallel",),
            vmem_limit_bytes=_VMEM_LIMIT_BYTES,
        ),
        cost_estimate=cost,
    )(sp, w)

    if C_out_pad != C_out and not keep_padded_out:
        out = out[:, :C_out]
    return out


def _reference(node_attrs, weight):
    c_in = node_attrs.shape[1]
    return node_attrs @ weight / math.sqrt(c_in)


if __name__ == "__main__":
    key = jax.random.PRNGKey(0)
    k_species, k_w = jax.random.split(key, 2)

    # Small shapes: 16 nodes, 8 chemical elements (one-hot 0e attrs) -> 32x0e.
    N, num_elements, hidden = 16, 8, 32

    species = jax.random.randint(k_species, (N,), 0, num_elements)
    node_attrs = jax.nn.one_hot(species, num_elements, dtype=jnp.float32)
    # e3nn initializes o3.Linear weights ~ N(0, 1)
    weight = jax.random.normal(k_w, (num_elements, hidden), dtype=jnp.float32)

    ref = _reference(node_attrs, weight)

    # Dense one-hot path (matches LinearNodeEmbeddingBlock.forward signature).
    out = jax.block_until_ready(linear_node_embedding(node_attrs, weight))
    assert out.shape == (N, hidden)
    assert jnp.allclose(out, ref, atol=1e-5, rtol=1e-5)

    # Index-streaming fast path (same semantics, ~C_in x less input traffic).
    out2 = jax.block_until_ready(linear_node_embedding_from_species(species, weight))
    assert out2.shape == (N, hidden)
    assert jnp.allclose(out2, ref, atol=1e-5, rtol=1e-5)

    print("KERNEL_OK")
</pallas_src>

<mosaic_0001>
module attributes {stable_mosaic.version = 11 : i64} {
  func.func @_linear_embed_kernel(%arg0: i32, %arg1: memref<8x8xf32, #tpu.memory_space<vmem>>, %arg2: memref<8x128xf32, #tpu.memory_space<vmem>>, %arg3: memref<8x128xf32, #tpu.memory_space<vmem>>) attributes {dimension_semantics = [#tpu.dimension_semantics<parallel>], iteration_bounds = array<i64: 2>, scalar_prefetch = 0 : i64, scratch_operands = 0 : i64, tpu.core_type = #tpu.core_type<tc>, window_params = [{transform_indices = @transform_0, window_bounds = array<i64: 8, 8>}, {pipeline_mode = #tpu.pipeline_mode<synchronous>, transform_indices = @transform_1, window_bounds = array<i64: 8, 128>}, {transform_indices = @transform_2, window_bounds = array<i64: 8, 128>}]} {
    %c0 = arith.constant 0 : index
    %c0_0 = arith.constant 0 : index
    %0 = vector.load %arg1[%c0, %c0_0] : memref<8x8xf32, #tpu.memory_space<vmem>>, vector<8x8xf32>
    %c0_1 = arith.constant 0 : index
    %c0_2 = arith.constant 0 : index
    %1 = vector.load %arg2[%c0_1, %c0_2] : memref<8x128xf32, #tpu.memory_space<vmem>>, vector<8x128xf32>
    %cst = arith.constant dense<0.000000e+00> : vector<8x128xf32>
    %2 = tpu.matmul %0, %1, %cst {dimension_numbers = #tpu.dot_dimension_numbers<[1], [0], [0], [1], [0, 0, 1, 1], [], []>} : vector<8x8xf32>, vector<8x128xf32>, vector<8x128xf32> -> vector<8x128xf32>
    %cst_3 = arith.constant 0.353553385 : f32
    %3 = vector.broadcast %cst_3 : f32 to vector<8x128xf32>
    %4 = arith.mulf %2, %3 : vector<8x128xf32>
    %c0_4 = arith.constant 0 : index
    %c0_5 = arith.constant 0 : index
    %5 = vector.load %arg3[%c0_4, %c0_5] : memref<8x128xf32, #tpu.memory_space<vmem>>, vector<8x128xf32>
    tpu.vector_store %arg3[%c0_4, %c0_5], %4 {strides = array<i32>} : memref<8x128xf32, #tpu.memory_space<vmem>>, vector<8x128xf32>,
    return
  }
  func.func @transform_0(%arg0: i32) -> (i32, i32) {
    %c0_i32 = arith.constant 0 : i32
    %c0_i32_0 = arith.constant 0 : i32
    return %arg0, %c0_i32 : i32, i32
  }
  func.func @transform_1(%arg0: i32) -> (i32, i32) {
    %c0_i32 = arith.constant 0 : i32
    %c0_i32_0 = arith.constant 0 : i32
    %c0_i32_1 = arith.constant 0 : i32
    return %c0_i32, %c0_i32_0 : i32, i32
  }
  func.func @transform_2(%arg0: i32) -> (i32, i32) {
    %c0_i32 = arith.constant 0 : i32
    %c0_i32_0 = arith.constant 0 : i32
    return %arg0, %c0_i32 : i32, i32
  }
}

</mosaic_0001>

<llo_original>
// kernel: tpu_custom_call.1
$region0: #{tpu_custom_call.1}
  #allocation0 [shape = 'u32[]', space=smem, size = 0x4, offset = 0x4, fixed_abs, tag = 'smem constant byte address 0x4 - core index']
  #allocation1 [shape = 'u32[72,128]{1,0:T(1,128)}', space=vmem, size = 0x9000, scoped, tag = 'internal scratch']
  %s0 = inlined_call_operand.vmem [shape: f32[16,8], index: 0, kind: input, shape index: {}]
  %s1 = inlined_call_operand.vmem [shape: f32[8,128], index: 1, kind: input, shape index: {}]
  %s2 = inlined_call_operand.hbm [shape: f32[16,128], index: 2, kind: output, shape index: {}]
  %s3 = sld [smem:[#allocation0]]
  $region41: #{tpu_custom_call.1} parent=0
    _
  %s5 = ssub.s32 1, %s3
  %s6 = scalar_select 0, %s5, %s3
  $region1: #{tpu_custom_call.1} parent=0
    #allocation2 [shape = 'u8[8192]{0}', space=vmem, size = 0x2000, scoped, tag = 'output window, operand 0']
    #allocation3 [shape = 's32[2]{0}', space=sflag, size = 0x8, scoped, tag = 'scoped memory for tpu_custom_call.1']
    %7 = vsyncpa [#allocation3], 0
    %s8 = scalar_lea.sflag [#allocation3], 1
    %9 = vsyncpa %s8, 0
    loop: start=0, step=1, limit=4
    $region2: #{tpu_custom_call.1} parent=1 // loop_pre_header
      _
    $region3: #{tpu_custom_call.1} parent=1 // loop_header
      %s11 = sphi 0, %s15
      %p12 = scmp.ge.s32.totalorder %s11, 4
      %s21 = sphi 0, %s23
      %s24 = sphi 0, %s21
      %s25 = sphi 0, %s24
      %s41 = sphi 0, %s25
      %s45 = sphi 0, %s45
      %s47 = sphi 0, %s45
      %s48 = sphi 0, %s47
      %s62 = sphi 0, %s48
      %s68 = sphi 0, %s70
      %s71 = sphi 0, %s68
      %s72 = sphi 0, %s71
      %s88 = sphi 0, %s72
    $region4: #{tpu_custom_call.1} parent=1 // loop_header_branch
      %14 = sbr.rel (%p12) target = $region8
    $region5: #{tpu_custom_call.1} parent=1 // loop_body
      %s16 = ssub.s32 %s11, 1
      %s17 = ssub.s32 %s11, 2
      %s18 = sadd.s32 %s11, 1
      %s19 = ssub.s32 %s11, %s18
      %p20 = scmp.eq.s32.totalorder %s19, 0
      %s22 = sadd.s32 %s21, 1
      %s23 = scalar_select %p20, %s21, %s22
      %p26 = pneg %p20
      %p27 = scmp.eq.s32.totalorder %s11, 1
      %p28 = por %p26, %p27
      %p29 = scmp.ne.s32.totalorder %s21, %s24
      %p30 = scmp.eq.s32.totalorder %s11, 0
      %p31 = por %p29, %p30
      %p32 = scmp.ne.s32.totalorder %s21, %s24
      %p33 = scmp.eq.s32.totalorder %s16, 1
      %p34 = por %p32, %p33
      %p35 = scmp.ne.s32.totalorder %s24, %s25
      %p36 = scmp.eq.s32.totalorder %s16, 0
      %p37 = por %p35, %p36
      %p38 = scmp.ne.s32.totalorder %s24, %s25
      %p39 = scmp.eq.s32.totalorder %s17, 1
      %p40 = por %p38, %p39
      %p42 = scmp.ne.s32.totalorder %s25, %s41
      %p43 = scmp.eq.s32.totalorder %s17, 0
      %p44 = por %p42, %p43
      %s46 = sadd.s32 %s45, 1
      %p49 = scmp.eq.s32.totalorder %s11, 1
      %p50 = scmp.ne.s32.totalorder %s45, %s47
      %p51 = scmp.eq.s32.totalorder %s11, 0
      %p52 = por %p50, %p51
      %p53 = scmp.ne.s32.totalorder %s45, %s47
      %p54 = scmp.eq.s32.totalorder %s16, 1
      %p55 = por %p53, %p54
      %p56 = scmp.ne.s32.totalorder %s47, %s48
      %p57 = scmp.eq.s32.totalorder %s16, 0
      %p58 = por %p56, %p57
      %p59 = scmp.ne.s32.totalorder %s47, %s48
      %p60 = scmp.eq.s32.totalorder %s17, 1
      %p61 = por %p59, %p60
      %p63 = scmp.ne.s32.totalorder %s48, %s62
      %p64 = scmp.eq.s32.totalorder %s17, 0
      %p65 = por %p63, %p64
      %s66 = ssub.s32 %s11, %s18
      %p67 = scmp.eq.s32.totalorder %s66, 0
      %s69 = sadd.s32 %s68, 1
      %s70 = scalar_select %p67, %s68, %s69
      %p73 = pneg %p67
      %p74 = scmp.eq.s32.totalorder %s11, 1
      %p75 = por %p73, %p74
      %p76 = scmp.ne.s32.totalorder %s68, %s71
      %p77 = scmp.eq.s32.totalorder %s11, 0
      %p78 = por %p76, %p77
      %p79 = scmp.ne.s32.totalorder %s68, %s71
      %p80 = scmp.eq.s32.totalorder %s16, 1
      %p81 = por %p79, %p80
      %p82 = scmp.ne.s32.totalorder %s71, %s72
      %p83 = scmp.eq.s32.totalorder %s16, 0
      %p84 = por %p82, %p83
      %p85 = scmp.ne.s32.totalorder %s71, %s72
      %p86 = scmp.eq.s32.totalorder %s17, 1
      %p87 = por %p85, %p86
      %p89 = scmp.ne.s32.totalorder %s72, %s88
      %p90 = scmp.eq.s32.totalorder %s17, 0
      %p91 = por %p89, %p90
      %p92 = scmp.le.s32.totalorder 1, %s11
      %p93 = scmp.lt.s32.totalorder %s11, 3
      %p94 = pnand %p92, %p93
      %p95 = pneg %p94
      // Predicated region
      $region9: #{tpu_custom_call.1} parent=5 // pred_check
        _
      $region10: #{tpu_custom_call.1} parent=5 // pred_check_branch
        %97 = sbr.rel (%p94) target = $region12
      $region11: #{tpu_custom_call.1} parent=5 // pred_region
        %s98 = ssub.s32 %s11, 1
        // Predicated region
        $region13: #{tpu_custom_call.1} parent=11 // pred_check
          %p99 = pneg %p58
        $region14: #{tpu_custom_call.1} parent=11 // pred_check_branch
          %101 = sbr.rel (%p99) target = $region16
        $region15: #{tpu_custom_call.1} parent=11 // pred_region
          _
        $region16: #{tpu_custom_call.1} parent=11 // pred_fallthru
          _
      $region12: #{tpu_custom_call.1} parent=5 // pred_fallthru
        _
      %p102 = scmp.lt.s32.totalorder %s11, 2
      // Predicated region
      $region17: #{tpu_custom_call.1} parent=5 // pred_check
        %p103 = pneg %p102
      $region18: #{tpu_custom_call.1} parent=5 // pred_check_branch
        %105 = sbr.rel (%p103) target = $region20
      $region19: #{tpu_custom_call.1} parent=5 // pred_region
        // Predicated region
        $region21: #{tpu_custom_call.1} parent=19 // pred_check
          %p106 = pneg %p31
        $region22: #{tpu_custom_call.1} parent=19 // pred_check_branch
          %108 = sbr.rel (%p106) target = $region24
        $region23: #{tpu_custom_call.1} parent=19 // pred_region
          %p109 = scmp.lt.s32.totalorder %s11, 1
          %s110 = scalar_select %p109, %s11, 1
          %s111 = smul.addr %s110, 8
          %s112 = scalar_lea.vmem %s0, %s111
        $region24: #{tpu_custom_call.1} parent=19 // pred_fallthru
          _
      $region20: #{tpu_custom_call.1} parent=5 // pred_fallthru
        _
      %p113 = scmp.le.s32.totalorder 1, %s11
      %p114 = scmp.lt.s32.totalorder %s11, 3
      %p115 = pnand %p113, %p114
      %p116 = pneg %p115
      // Predicated region
      $region25: #{tpu_custom_call.1} parent=5 // pred_check
        _
      $region26: #{tpu_custom_call.1} parent=5 // pred_check_branch
        %118 = sbr.rel (%p115) target = $region28
      $region27: #{tpu_custom_call.1} parent=5 // pred_region
        %s119 = ssub.s32 %s11, 1
        %p120 = scmp.lt.s32.totalorder %s16, 1
        %s121 = scalar_select %p120, %s16, 1
        %s122 = smul.addr %s121, 8
        %s123 = scalar_lea.vmem %s0, %s122
        %p124 = pneg %p37
        %p125 = pneg %p34
        %p126 = pneg %p58
        %p127 = pneg %p55
        %p128 = pneg %p84
        %p129 = pneg %p81
        %s130 = sand.u32 %s71, 1
        %s131 = scalar_lea.sflag [#allocation3], %s130
        %s132 = sand.u32 %s71, 1
        %s133 = smul.addr %s132, 8
        %s134 = scalar_lea.vmem [#allocation2], %s133
        %p135 = scmp.lt.s32.totalorder %s16, 1
        %s136 = scalar_select %p135, %s16, 1
        %s137 = smul.addr %s136, 8
        %s138 = scalar_lea.vmem %s0, %s137
        %v139 = vld [vmem:[%s138] sm:$0xff]
        %v140 = vld [vmem:[%s1] sm:$0xff]
        %vm141 = vcmask 64512
        %v143 = vsel %vm141, %v139, 0
        %145 = vmatpush.msra.mxu0 0.0
        %146 = vmatpush.msra.mxu0 0.0
        %147 = vmatpush.msra.mxu0 0.0
        %148 = vmatpush.msra.mxu0 0.0
        %149 = vmatpush.msra.mxu0 0.0
        %150 = vmatpush.msra.mxu0 0.0
        %151 = vmatpush.msra.mxu0 0.0
        %152 = vmatpush.msra.mxu0 0.0
        %153 = vmatpush.msra.mxu0 0.0
        %154 = vmatpush.msra.mxu0 0.0
        %155 = vmatpush.msra.mxu0 0.0
        %156 = vmatpush.msra.mxu0 0.0
        %157 = vmatpush.msra.mxu0 0.0
        %158 = vmatpush.msra.mxu0 0.0
        %159 = vmatpush.msra.mxu0 0.0
        %160 = vmatpush.msra.mxu0 %v140
        %161 = vmatmul.f32.gmra.mxu0 %v143
        %v162 = vpop.f32.mrf.mxu0
        %v163 = vadd.f32 0.0, %v162
        %164 = vdwg.mxu0
        %v165 = vmul.f32 %v163, 0.35355338
        %166 = vst [vmem:[%s134] sm:$0xff] %v165
        %s167 = sand.u32 %s71, 1
        %s168 = scalar_lea.sflag [#allocation3], %s167
        %s169 = sand.u32 %s71, 1
        %s170 = smul.addr %s169, 8
        %s171 = scalar_lea.vmem [#allocation2], %s170
        // Predicated region
        $region29: #{tpu_custom_call.1} parent=27 // pred_check
          %p172 = pneg %p81
        $region30: #{tpu_custom_call.1} parent=27 // pred_check_branch
          %174 = sbr.rel (%p172) target = $region32
        $region31: #{tpu_custom_call.1} parent=27 // pred_region
          %176 = vsyncadd %s168, 0
          %s177 = smul.addr %s16, 8
          %s178 = scalar_lea.hbm %s2, %s177
          %s180 = sshll.u32 %s171, 4
          %s181 = int_to_ptr.vmem [resolvable:$true] %s180
          %s182 = sshll.u32 %s178, 4
          %s183 = int_to_ptr.hbm [resolvable:$true] %s182
          %185 = dma.vmem_to_hbm [thread:$0]  %s181, 128, %s183, %s168
        $region32: #{tpu_custom_call.1} parent=27 // pred_fallthru
          _
      $region28: #{tpu_custom_call.1} parent=5 // pred_fallthru
        _
      %p186 = scmp.le.s32.totalorder 2, %s11
      // Predicated region
      $region33: #{tpu_custom_call.1} parent=5 // pred_check
        %p187 = pneg %p186
      $region34: #{tpu_custom_call.1} parent=5 // pred_check_branch
        %189 = sbr.rel (%p187) target = $region36
      $region35: #{tpu_custom_call.1} parent=5 // pred_region
        %s190 = ssub.s32 %s11, 2
        // Predicated region
        $region37: #{tpu_custom_call.1} parent=35 // pred_check
          %p191 = pneg %p87
        $region38: #{tpu_custom_call.1} parent=35 // pred_check_branch
          %193 = sbr.rel (%p191) target = $region40
        $region39: #{tpu_custom_call.1} parent=35 // pred_region
          %s194 = sand.u32 %s72, 1
          %s195 = scalar_lea.sflag [#allocation3], %s194
          %s196 = sand.u32 %s72, 1
          %s197 = smul.addr %s196, 8
          %s198 = scalar_lea.vmem [#allocation2], %s197
          %200 = dma.done %s195, 128
        $region40: #{tpu_custom_call.1} parent=35 // pred_fallthru
          _
      $region36: #{tpu_custom_call.1} parent=5 // pred_fallthru
        _
    $region6: #{tpu_custom_call.1} parent=1 // loop_footer
      %s15 = sadd.s32 1, %s11
    $region7: #{tpu_custom_call.1} parent=1 // loop_footer_branch
      %10 = sbr.rel target = $region3
    $region8: #{tpu_custom_call.1} parent=1 // loop_exit
      _
    %201 = vsyncpa [#allocation3], 1
    %s202 = scalar_lea.sflag [#allocation3], 1
    %203 = vsyncpa %s202, 1

</llo_original>
